<compile_context>
chip_gen: v5e
topology: v5e:2x2
jax: 0.10.0
libtpu: 0.0.40
codegen_flags: <defaults>
</compile_context>

<pallas_src>
import functools
import math

import jax
import jax.numpy as jnp
from jax.experimental import pallas as pl
from jax.experimental.pallas import tpu as pltpu


def head_kernel(x_ref, wqkv_ref, bias_ref, ot_ref, *, mxu_dtype):
    """One grid step processes `block_b` batch elements.

    x_ref    : (block_b, T, C)  input slab (pipelined over the batch grid)
    wqkv_ref : (C, 3H)          fused, pre-transposed [Wq | Wk | Wv] (VMEM resident)
    bias_ref : (T, T)           additive causal bias: 0 on/below diag, -1e30 above
                                (VMEM resident; replaces per-step iota/where mask)
    ot_ref   : (block_b, H, T)  lane-dense transposed output slab (last dim = T)
    """
    bb, T, C = x_ref.shape
    H = ot_ref.shape[1]

    # Fused QKV projection: single contraction over C (equivalent to the big-M
    # flattened matmul, but with no reshape so no T % 8 requirement).  f32 acc.
    qkv = jnp.einsum("btc,ch->bth", x_ref[...], wqkv_ref[...],
                     preferred_element_type=jnp.float32)            # (bb, T, 3H)

    # Fold the softmax scale into q (C**-0.5 over n_embd, exactly as the PyTorch
    # module -- NOT head_size).  MXU operands in mxu_dtype (bf16 for f32 inputs).
    q = (qkv[:, :, :H] * (C ** -0.5)).astype(mxu_dtype)
    k = qkv[:, :, H:2 * H].astype(mxu_dtype)
    v = qkv[:, :, 2 * H:].astype(mxu_dtype)

    # Scores: batched q @ k^T (contraction over the last dims), f32 accumulate.
    s = jnp.einsum("bqh,bkh->bqk", q, k, preferred_element_type=jnp.float32)

    # Numerically stable masked softmax.  The causal mask is fused into the exp
    # pass via the resident additive bias: s + bias <= s <= m, so the row max of
    # s alone is a valid stabilizer and masked entries underflow to exactly 0.
    m = jnp.max(s, axis=-1, keepdims=True)                          # (bb, T, 1)
    e = jnp.exp(s + bias_ref[...][None, :, :] - m)                  # one slab pass
    denom = jnp.sum(e, axis=-1)                                     # (bb, T)

    # TODO(synk): nn.Dropout(p=0.2) on the attention probabilities omitted --
    # identity in eval mode (training parity needs pltpu.prng_seed/prng_random_bits).

    # Unnormalized PV matmul computed directly in transposed (bb, H, T) form so
    # the MXU result, the normalize multiply and the output store are all
    # lane-dense (T in the lane dim) instead of masked 16-lane stores.  The v
    # transpose is over a tiny (T, H) tile; the matmul is the natively supported
    # A @ B^T form (same as the score matmul).
    v_t = jnp.swapaxes(v, 1, 2)                                     # (bb, H, T)
    out_t = jnp.einsum("bhk,bqk->bhq", v_t, e.astype(mxu_dtype),
                       preferred_element_type=jnp.float32)          # (bb, H, T)

    # Normalize after the matmul: exact reciprocal over the tiny (bb, T) denom,
    # multiply over the small output instead of the (bb, T, T) slab.
    inv = 1.0 / denom
    ot_ref[...] = (out_t * inv[:, None, :]).astype(ot_ref.dtype)


def _pad(n, m):
    return ((n + m - 1) // m) * m


def _est_vmem_bytes(bb, T, C, H, in_itemsize, mxu_itemsize):
    """(8,128)-tile-padding-aware VMEM estimate for one grid step:
    double-buffered DMA windows plus compiler-managed f32 intermediates."""
    f32 = 4
    # Pipelined / resident DMA buffers (Pallas allocates 2 buffers per spec).
    x_buf = 2 * bb * _pad(T, 8) * _pad(C, 128) * in_itemsize
    out_buf = 2 * bb * _pad(H, 8) * _pad(T, 128) * in_itemsize
    wqkv_buf = 2 * _pad(C, 8) * _pad(3 * H, 128) * in_itemsize
    bias_buf = 2 * _pad(T, 8) * _pad(T, 128) * f32
    # Compiler-managed intermediates (conservative: s and e counted live together).
    qkv = bb * _pad(T, 8) * _pad(3 * H, 128) * f32
    qkv_slices = 4 * bb * _pad(T, 8) * _pad(H, 128) * f32           # q, k, v, v_t
    slabs = 2 * bb * _pad(T, 8) * _pad(T, 128) * f32                # s and e
    p_mxu = bb * _pad(T, 16 if mxu_itemsize == 2 else 8) * _pad(T, 128) * mxu_itemsize
    out_f32 = bb * _pad(H, 8) * _pad(T, 128) * f32
    return (x_buf + out_buf + wqkv_buf + bias_buf
            + qkv + qkv_slices + slabs + p_mxu + out_f32)


def _choose_block_b(B, T, C, H, in_itemsize, mxu_itemsize, vmem_budget,
                    prefer_even_steps):
    """Largest batch tile dividing B that fits the padding-aware VMEM budget.
    On 2-TensorCore parts (v7x) prefer an even number of grid steps so neither
    core idles on a tail step; on 1-TC parts (v5e/v6e) the biggest block wins."""
    divisors = [d for d in range(1, B + 1) if B % d == 0]
    fitting = [d for d in divisors
               if _est_vmem_bytes(d, T, C, H, in_itemsize, mxu_itemsize)
               <= vmem_budget]
    if not fitting:
        return 1
    if prefer_even_steps:
        even = [d for d in fitting if (B // d) % 2 == 0]
        if even:
            return max(even)
    return max(fitting)


def _vmem_capacity_bytes():
    """Per-TensorCore VMEM capacity; conservative (v7x-sized) fallback."""
    try:
        cap = getattr(pltpu.get_tpu_info(), "vmem_capacity_bytes", None)
        if cap:
            return int(cap)
    except Exception:
        pass
    return 64 * 1024 * 1024


def head_forward(x, w_key, w_query, w_value, *, block_b=None, mxu_dtype=None):
    """x: (B, T, C); weights: (H, C) in PyTorch nn.Linear layout.  Returns (B, T, H)."""
    B, T, C = x.shape
    H = w_key.shape[0]

    # bf16 MXU operands (with f32 accumulation) by default for f32 inputs: all
    # three generations' MXUs are bf16-native.  mxu_dtype=jnp.float32 opts out.
    if mxu_dtype is None:
        mxu_dtype = jnp.bfloat16 if x.dtype == jnp.float32 else x.dtype
    mxu_dtype = jnp.dtype(mxu_dtype)

    # Generation-aware VMEM sizing.
    vmem_cap = _vmem_capacity_bytes()
    if vmem_cap <= 80 * 1024 * 1024:
        # v7x-class: 64 MiB per TC, 2 TensorCores -> conservative + even steps.
        vmem_limit = 48 * 1024 * 1024
        chooser_budget = 40 * 1024 * 1024
        prefer_even_steps = True
    else:
        # v5e/v6e-class: 128 MiB, single TensorCore -> fewer, larger steps.
        vmem_limit = 100 * 1024 * 1024
        chooser_budget = 64 * 1024 * 1024
        prefer_even_steps = False

    if block_b is None:
        block_b = _choose_block_b(B, T, C, H, x.dtype.itemsize, mxu_dtype.itemsize,
                                  chooser_budget, prefer_even_steps)
    assert B % block_b == 0, "batch must be divisible by block_b"

    # Fused, pre-transposed QKV weight: (C, 3H), applied as x @ Wqkv in-kernel.
    wqkv = jnp.concatenate([w_query.T, w_key.T, w_value.T], axis=1).astype(x.dtype)

    # Precomputed additive causal bias (0 on/below the diagonal, -1e30 above).
    # Passed with a constant index_map so it stays VMEM-resident across steps.
    tril = jnp.tril(jnp.ones((T, T), dtype=bool))
    bias = jnp.where(tril, 0.0, -1e30).astype(jnp.float32)

    grid = (B // block_b,)

    cost = pl.CostEstimate(
        flops=2 * B * T * C * 3 * H + 4 * B * T * T * H,
        transcendentals=B * T * T,
        bytes_accessed=(B * T * C + C * 3 * H + B * T * H) * x.dtype.itemsize
                       + T * T * 4,
    )

    grid_spec = pltpu.PrefetchScalarGridSpec(
        num_scalar_prefetch=0,
        grid=grid,
        in_specs=[
            pl.BlockSpec((block_b, T, C), lambda b: (b, 0, 0)),   # x slab (pipelined)
            pl.BlockSpec((C, 3 * H), lambda b: (0, 0)),           # fused Wqkv (resident)
            pl.BlockSpec((T, T), lambda b: (0, 0)),               # causal bias (resident)
        ],
        out_specs=pl.BlockSpec((block_b, H, T), lambda b: (b, 0, 0)),
    )

    out_t = pl.pallas_call(
        functools.partial(head_kernel, mxu_dtype=mxu_dtype),
        out_shape=jax.ShapeDtypeStruct((B, H, T), x.dtype),
        grid_spec=grid_spec,
        compiler_params=pltpu.CompilerParams(
            dimension_semantics=("parallel",),
            vmem_limit_bytes=vmem_limit,
        ),
        cost_estimate=cost,
    )(x, wqkv, bias)

    # TODO(synk): a fused multi-head consumer should take the lane-dense (B, H, T)
    # layout directly; we transpose back only for PyTorch output-shape parity.
    return jnp.swapaxes(out_t, 1, 2)


def head_reference(x, w_key, w_query, w_value):
    """Pure-JAX reference matching the PyTorch forward (eval mode)."""
    B, T, C = x.shape
    hi = jax.lax.Precision.HIGHEST
    k = jnp.einsum("btc,hc->bth", x, w_key, precision=hi)
    q = jnp.einsum("btc,hc->bth", x, w_query, precision=hi)
    v = jnp.einsum("btc,hc->bth", x, w_value, precision=hi)
    wei = jnp.einsum("bth,bsh->bts", q, k, precision=hi) * (C ** -0.5)
    tril = jnp.tril(jnp.ones((T, T), dtype=bool))
    wei = jnp.where(tril, wei, -jnp.inf)
    wei = jax.nn.softmax(wei, axis=-1)
    return jnp.einsum("bts,bsh->bth", wei, v, precision=hi)


if __name__ == "__main__":
    # Small, self-consistent shapes: B=8, T=16 (seq), n_embd=32, head_size=16.
    B, T, n_embd, head_size = 8, 16, 32, 16

    key = jax.random.PRNGKey(0)
    kx, kk, kq, kv = jax.random.split(key, 4)

    x = jax.random.normal(kx, (B, T, n_embd), dtype=jnp.float32)

    # Deterministic PyTorch-style init: U(-1/sqrt(in), 1/sqrt(in)), shape (out, in).
    bound = 1.0 / math.sqrt(n_embd)
    w_key = jax.random.uniform(kk, (head_size, n_embd), jnp.float32, -bound, bound)
    w_query = jax.random.uniform(kq, (head_size, n_embd), jnp.float32, -bound, bound)
    w_value = jax.random.uniform(kv, (head_size, n_embd), jnp.float32, -bound, bound)

    ref = head_reference(x, w_key, w_query, w_value)

    # Full-precision path (f32 MXU operands, exact reciprocal): tight tolerance.
    out_exact = jax.block_until_ready(
        head_forward(x, w_key, w_query, w_value, mxu_dtype=jnp.float32))
    assert out_exact.shape == (B, T, head_size)
    assert jnp.allclose(out_exact, ref, atol=5e-3, rtol=5e-3), "f32 path mismatch"

    # Default fast path: bf16 MXU operands, f32 accumulation + f32 softmax math.
    out = jax.block_until_ready(head_forward(x, w_key, w_query, w_value))
    assert out.shape == (B, T, head_size)
    assert jnp.allclose(out, ref, atol=2.5e-2, rtol=2.5e-2), "bf16 path mismatch"

    print("KERNEL_OK")
</pallas_src>

<mosaic_0001>
module attributes {stable_mosaic.version = 11 : i64} {
  func.func @head_kernel(%arg0: i32, %arg1: memref<4x16x32xf32, #tpu.memory_space<vmem>>, %arg2: memref<32x48xf32, #tpu.memory_space<vmem>>, %arg3: memref<16x16xf32, #tpu.memory_space<vmem>>, %arg4: memref<4x16x16xf32, #tpu.memory_space<vmem>>) attributes {dimension_semantics = [#tpu.dimension_semantics<parallel>], iteration_bounds = array<i64: 2>, scalar_prefetch = 0 : i64, scratch_operands = 0 : i64, tpu.core_type = #tpu.core_type<tc>, window_params = [{transform_indices = @transform_0, window_bounds = array<i64: 4, 16, 32>}, {pipeline_mode = #tpu.pipeline_mode<synchronous>, transform_indices = @transform_1, window_bounds = array<i64: 32, 48>}, {pipeline_mode = #tpu.pipeline_mode<synchronous>, transform_indices = @transform_2, window_bounds = array<i64: 16, 16>}, {transform_indices = @transform_3, window_bounds = array<i64: 4, 16, 16>}]} {
    %c0 = arith.constant 0 : index
    %c0_0 = arith.constant 0 : index
    %c0_1 = arith.constant 0 : index
    %0 = vector.load %arg1[%c0, %c0_0, %c0_1] : memref<4x16x32xf32, #tpu.memory_space<vmem>>, vector<4x16x32xf32>
    %c0_2 = arith.constant 0 : index
    %c0_3 = arith.constant 0 : index
    %1 = vector.load %arg2[%c0_2, %c0_3] : memref<32x48xf32, #tpu.memory_space<vmem>>, vector<32x48xf32>
    "tpu.trace_start"() <{level = 10 : i32, message = "btc,ch->bth"}> : () -> ()
    %cst = arith.constant dense<0.000000e+00> : vector<4x16x48xf32>
    %2 = tpu.matmul %0, %1, %cst {dimension_numbers = #tpu.dot_dimension_numbers<[2], [0], [0, 1], [1], [0, 0, 0, 1, 1, 1], [], []>} : vector<4x16x32xf32>, vector<32x48xf32>, vector<4x16x48xf32> -> vector<4x16x48xf32>
    "tpu.trace_stop"() : () -> ()
    %3 = vector.extract_strided_slice %2 {offsets = [0, 0, 0], sizes = [4, 16, 16], strides = [1, 1, 1]} : vector<4x16x48xf32> to vector<4x16x16xf32>
    %cst_4 = arith.constant 0.176776692 : f32
    %4 = vector.broadcast %cst_4 : f32 to vector<4x16x16xf32>
    %5 = arith.mulf %3, %4 : vector<4x16x16xf32>
    %6 = vector.extract_strided_slice %2 {offsets = [0, 0, 16], sizes = [4, 16, 16], strides = [1, 1, 1]} : vector<4x16x48xf32> to vector<4x16x16xf32>
    %7 = vector.extract_strided_slice %2 {offsets = [0, 0, 32], sizes = [4, 16, 16], strides = [1, 1, 1]} : vector<4x16x48xf32> to vector<4x16x16xf32>
    "tpu.trace_start"() <{level = 10 : i32, message = "bqh,bkh->bqk"}> : () -> ()
    %cst_5 = arith.constant dense<0.000000e+00> : vector<4x16x16xf32>
    %8 = tpu.matmul %5, %6, %cst_5 {dimension_numbers = #tpu.dot_dimension_numbers<[2], [2], [1], [1], [0, 0, 0, 1, 1, 1], [0], [0]>} : vector<4x16x16xf32>, vector<4x16x16xf32>, vector<4x16x16xf32> -> vector<4x16x16xf32>
    "tpu.trace_stop"() : () -> ()
    %cst_6 = arith.constant dense<0xFF800000> : vector<4x16xf32>
    %9 = vector.multi_reduction <maximumf>, %8, %cst_6 [2] : vector<4x16x16xf32> to vector<4x16xf32>
    %10 = vector.shape_cast %9 : vector<4x16xf32> to vector<4x16x1xf32>
    %c0_7 = arith.constant 0 : index
    %c0_8 = arith.constant 0 : index
    %11 = vector.load %arg3[%c0_7, %c0_8] : memref<16x16xf32, #tpu.memory_space<vmem>>, vector<16x16xf32>
    %12 = vector.shape_cast %11 : vector<16x16xf32> to vector<1x16x16xf32>
    %13 = vector.broadcast %12 : vector<1x16x16xf32> to vector<4x16x16xf32>
    %14 = arith.addf %8, %13 : vector<4x16x16xf32>
    %15 = vector.broadcast %10 : vector<4x16x1xf32> to vector<4x16x16xf32>
    %16 = arith.subf %14, %15 : vector<4x16x16xf32>
    %17 = math.exp %16 : vector<4x16x16xf32>
    %cst_9 = arith.constant dense<0.000000e+00> : vector<4x16xf32>
    %18 = vector.multi_reduction <add>, %17, %cst_9 [2] : vector<4x16x16xf32> to vector<4x16xf32>
    %19 = tpu.transpose %7, [0, 2, 1] : vector<4x16x16xf32> -> vector<4x16x16xf32>
    "tpu.trace_start"() <{level = 10 : i32, message = "bhk,bqk->bhq"}> : () -> ()
    %cst_10 = arith.constant dense<0.000000e+00> : vector<4x16x16xf32>
    %20 = tpu.matmul %19, %17, %cst_10 {dimension_numbers = #tpu.dot_dimension_numbers<[2], [2], [1], [1], [0, 0, 0, 1, 1, 1], [0], [0]>} : vector<4x16x16xf32>, vector<4x16x16xf32>, vector<4x16x16xf32> -> vector<4x16x16xf32>
    "tpu.trace_stop"() : () -> ()
    %cst_11 = arith.constant 1.000000e+00 : f32
    %21 = vector.broadcast %cst_11 : f32 to vector<4x16xf32>
    %22 = arith.divf %21, %18 : vector<4x16xf32>
    %23 = vector.shape_cast %22 : vector<4x16xf32> to vector<4x1x16xf32>
    %24 = vector.broadcast %23 : vector<4x1x16xf32> to vector<4x16x16xf32>
    %25 = arith.mulf %20, %24 : vector<4x16x16xf32>
    %c0_12 = arith.constant 0 : index
    %c0_13 = arith.constant 0 : index
    %c0_14 = arith.constant 0 : index
    %26 = vector.load %arg4[%c0_12, %c0_13, %c0_14] : memref<4x16x16xf32, #tpu.memory_space<vmem>>, vector<4x16x16xf32>
    tpu.vector_store %arg4[%c0_12, %c0_13, %c0_14], %25 {strides = array<i32>} : memref<4x16x16xf32, #tpu.memory_space<vmem>>, vector<4x16x16xf32>,
    return
  }
  func.func @transform_0(%arg0: i32) -> (i32, i32, i32) {
    %c0_i32 = arith.constant 0 : i32
    %c0_i32_0 = arith.constant 0 : i32
    %c0_i32_1 = arith.constant 0 : i32
    return %arg0, %c0_i32, %c0_i32_0 : i32, i32, i32
  }
  func.func @transform_1(%arg0: i32) -> (i32, i32) {
    %c0_i32 = arith.constant 0 : i32
    %c0_i32_0 = arith.constant 0 : i32
    %c0_i32_1 = arith.constant 0 : i32
    return %c0_i32, %c0_i32_0 : i32, i32
  }
  func.func @transform_2(%arg0: i32) -> (i32, i32) {
    %c0_i32 = arith.constant 0 : i32
    %c0_i32_0 = arith.constant 0 : i32
    %c0_i32_1 = arith.constant 0 : i32
    return %c0_i32, %c0_i32_0 : i32, i32
  }
  func.func @transform_3(%arg0: i32) -> (i32, i32, i32) {
    %c0_i32 = arith.constant 0 : i32
    %c0_i32_0 = arith.constant 0 : i32
    %c0_i32_1 = arith.constant 0 : i32
    return %arg0, %c0_i32, %c0_i32_0 : i32, i32, i32
  }
}

</mosaic_0001>

<llo_original>
// kernel: tpu_custom_call.1
$region0: #{tpu_custom_call.1}
  #allocation0 [shape = 'u32[]', space=smem, size = 0x4, offset = 0x4, fixed_abs, tag = 'smem constant byte address 0x4 - core index']
  #allocation1 [shape = 'u32[72,128]{1,0:T(1,128)}', space=vmem, size = 0x9000, scoped, tag = 'internal scratch']
  %s0 = inlined_call_operand.hbm [shape: f32[8,16,32], index: 0, kind: input, shape index: {}]
  %s1 = inlined_call_operand.hbm [shape: f32[32,48], index: 1, kind: input, shape index: {}]
  %s2 = inlined_call_operand.hbm [shape: f32[16,16], index: 2, kind: input, shape index: {}]
  %s3 = inlined_call_operand.hbm [shape: f32[8,16,16], index: 3, kind: output, shape index: {}]
  %s4 = sld [smem:[#allocation0]]
  $region57: #{tpu_custom_call.1} parent=0
    _
  %s6 = ssub.s32 1, %s4
  %s7 = scalar_select 0, %s6, %s4
  $region1: #{tpu_custom_call.1} parent=0
    #allocation2 [shape = 'u8[65536]{0}', space=vmem, size = 0x10000, scoped, tag = 'input window, operand 0']
    #allocation3 [shape = 's32[2]{0}', space=sflag, size = 0x8, scoped, tag = 'scoped memory for tpu_custom_call.1']
    #allocation4 [shape = 's32[2]{0}', space=sflag, size = 0x8, scoped, tag = 'scoped memory for tpu_custom_call.1']
    #allocation5 [shape = 'u8[16384]{0}', space=vmem, size = 0x4000, scoped, tag = 'input window, operand 1, single buffered']
    #allocation6 [shape = 's32[1]{0}', space=sflag, size = 0x4, scoped, tag = 'scoped memory for tpu_custom_call.1']
    #allocation7 [shape = 'u8[8192]{0}', space=vmem, size = 0x2000, scoped, tag = 'input window, operand 2, single buffered']
    #allocation8 [shape = 'u8[65536]{0}', space=vmem, size = 0x10000, scoped, tag = 'output window, operand 0']
    %8 = vsyncpa [#allocation3], 0
    %s9 = scalar_lea.sflag [#allocation3], 1
    %10 = vsyncpa %s9, 0
    %11 = vsyncpa [#allocation6], 0
    %12 = vsyncpa [#allocation4], 0
    %s13 = scalar_lea.sflag [#allocation4], 1
    %14 = vsyncpa %s13, 0
    loop: start=0, step=1, limit=4
    $region2: #{tpu_custom_call.1} parent=1 // loop_pre_header
      _
    $region3: #{tpu_custom_call.1} parent=1 // loop_header
      %s16 = sphi 0, %s20
      %p17 = scmp.ge.s32.totalorder %s16, 4
      %s26 = sphi 0, %s28
      %s29 = sphi 0, %s26
      %s30 = sphi 0, %s29
      %s46 = sphi 0, %s30
      %s50 = sphi 0, %s50
      %s52 = sphi 0, %s50
      %s53 = sphi 0, %s52
      %s67 = sphi 0, %s53
      %s71 = sphi 0, %s71
      %s73 = sphi 0, %s71
      %s74 = sphi 0, %s73
      %s88 = sphi 0, %s74
      %s94 = sphi 0, %s96
      %s97 = sphi 0, %s94
      %s98 = sphi 0, %s97
      %s114 = sphi 0, %s98
    $region4: #{tpu_custom_call.1} parent=1 // loop_header_branch
      %19 = sbr.rel (%p17) target = $region8
    $region5: #{tpu_custom_call.1} parent=1 // loop_body
      %s21 = ssub.s32 %s16, 1
      %s22 = ssub.s32 %s16, 2
      %s23 = sadd.s32 %s16, 1
      %s24 = ssub.s32 %s16, %s23
      %p25 = scmp.eq.s32.totalorder %s24, 0
      %s27 = sadd.s32 %s26, 1
      %s28 = scalar_select %p25, %s26, %s27
      %p31 = pneg %p25
      %p32 = scmp.eq.s32.totalorder %s16, 1
      %p33 = por %p31, %p32
      %p34 = scmp.ne.s32.totalorder %s26, %s29
      %p35 = scmp.eq.s32.totalorder %s16, 0
      %p36 = por %p34, %p35
      %p37 = scmp.ne.s32.totalorder %s26, %s29
      %p38 = scmp.eq.s32.totalorder %s21, 1
      %p39 = por %p37, %p38
      %p40 = scmp.ne.s32.totalorder %s29, %s30
      %p41 = scmp.eq.s32.totalorder %s21, 0
      %p42 = por %p40, %p41
      %p43 = scmp.ne.s32.totalorder %s29, %s30
      %p44 = scmp.eq.s32.totalorder %s22, 1
      %p45 = por %p43, %p44
      %p47 = scmp.ne.s32.totalorder %s30, %s46
      %p48 = scmp.eq.s32.totalorder %s22, 0
      %p49 = por %p47, %p48
      %s51 = sadd.s32 %s50, 1
      %p54 = scmp.eq.s32.totalorder %s16, 1
      %p55 = scmp.ne.s32.totalorder %s50, %s52
      %p56 = scmp.eq.s32.totalorder %s16, 0
      %p57 = por %p55, %p56
      %p58 = scmp.ne.s32.totalorder %s50, %s52
      %p59 = scmp.eq.s32.totalorder %s21, 1
      %p60 = por %p58, %p59
      %p61 = scmp.ne.s32.totalorder %s52, %s53
      %p62 = scmp.eq.s32.totalorder %s21, 0
      %p63 = por %p61, %p62
      %p64 = scmp.ne.s32.totalorder %s52, %s53
      %p65 = scmp.eq.s32.totalorder %s22, 1
      %p66 = por %p64, %p65
      %p68 = scmp.ne.s32.totalorder %s53, %s67
      %p69 = scmp.eq.s32.totalorder %s22, 0
      %p70 = por %p68, %p69
      %s72 = sadd.s32 %s71, 1
      %p75 = scmp.eq.s32.totalorder %s16, 1
      %p76 = scmp.ne.s32.totalorder %s71, %s73
      %p77 = scmp.eq.s32.totalorder %s16, 0
      %p78 = por %p76, %p77
      %p79 = scmp.ne.s32.totalorder %s71, %s73
      %p80 = scmp.eq.s32.totalorder %s21, 1
      %p81 = por %p79, %p80
      %p82 = scmp.ne.s32.totalorder %s73, %s74
      %p83 = scmp.eq.s32.totalorder %s21, 0
      %p84 = por %p82, %p83
      %p85 = scmp.ne.s32.totalorder %s73, %s74
      %p86 = scmp.eq.s32.totalorder %s22, 1
      %p87 = por %p85, %p86
      %p89 = scmp.ne.s32.totalorder %s74, %s88
      %p90 = scmp.eq.s32.totalorder %s22, 0
      %p91 = por %p89, %p90
      %s92 = ssub.s32 %s16, %s23
      %p93 = scmp.eq.s32.totalorder %s92, 0
      %s95 = sadd.s32 %s94, 1
      %s96 = scalar_select %p93, %s94, %s95
      %p99 = pneg %p93
      %p100 = scmp.eq.s32.totalorder %s16, 1
      %p101 = por %p99, %p100
      %p102 = scmp.ne.s32.totalorder %s94, %s97
      %p103 = scmp.eq.s32.totalorder %s16, 0
      %p104 = por %p102, %p103
      %p105 = scmp.ne.s32.totalorder %s94, %s97
      %p106 = scmp.eq.s32.totalorder %s21, 1
      %p107 = por %p105, %p106
      %p108 = scmp.ne.s32.totalorder %s97, %s98
      %p109 = scmp.eq.s32.totalorder %s21, 0
      %p110 = por %p108, %p109
      %p111 = scmp.ne.s32.totalorder %s97, %s98
      %p112 = scmp.eq.s32.totalorder %s22, 1
      %p113 = por %p111, %p112
      %p115 = scmp.ne.s32.totalorder %s98, %s114
      %p116 = scmp.eq.s32.totalorder %s22, 0
      %p117 = por %p115, %p116
      %p118 = scmp.le.s32.totalorder 1, %s16
      %p119 = scmp.lt.s32.totalorder %s16, 3
      %p120 = pnand %p118, %p119
      %p121 = pneg %p120
      // Predicated region
      $region9: #{tpu_custom_call.1} parent=5 // pred_check
        _
      $region10: #{tpu_custom_call.1} parent=5 // pred_check_branch
        %123 = sbr.rel (%p120) target = $region12
      $region11: #{tpu_custom_call.1} parent=5 // pred_region
        %s124 = ssub.s32 %s16, 1
        // Predicated region
        $region13: #{tpu_custom_call.1} parent=11 // pred_check
          %p125 = pneg %p63
        $region14: #{tpu_custom_call.1} parent=11 // pred_check_branch
          %127 = sbr.rel (%p125) target = $region16
        $region15: #{tpu_custom_call.1} parent=11 // pred_region
          %129 = vsyncadd [#allocation6], 0
          %s130 = sshll.u32 %s1, 4
          %s131 = int_to_ptr.hbm [resolvable:$true] %s130
          %s132 = sshll.u32 [#allocation5], 4
          %s133 = int_to_ptr.vmem [resolvable:$true] %s132
          %138 = dma.hbm_to_vmem [thread:$0]  %s131, 512, %s133, [#allocation6], 128, 128, 8
        $region16: #{tpu_custom_call.1} parent=11 // pred_fallthru
          _
        // Predicated region
        $region17: #{tpu_custom_call.1} parent=11 // pred_check
          %p139 = pneg %p84
        $region18: #{tpu_custom_call.1} parent=11 // pred_check_branch
          %141 = sbr.rel (%p139) target = $region20
        $region19: #{tpu_custom_call.1} parent=11 // pred_region
          %143 = vsyncadd [#allocation6], 0
          %s144 = sshll.u32 %s2, 4
          %s145 = int_to_ptr.hbm [resolvable:$true] %s144
          %s146 = sshll.u32 [#allocation7], 4
          %s147 = int_to_ptr.vmem [resolvable:$true] %s146
          %152 = dma.hbm_to_vmem [thread:$0]  %s145, 256, %s147, [#allocation6], 128, 128, 8
        $region20: #{tpu_custom_call.1} parent=11 // pred_fallthru
          _
      $region12: #{tpu_custom_call.1} parent=5 // pred_fallthru
        _
      %p153 = scmp.lt.s32.totalorder %s16, 2
      // Predicated region
      $region21: #{tpu_custom_call.1} parent=5 // pred_check
        %p154 = pneg %p153
      $region22: #{tpu_custom_call.1} parent=5 // pred_check_branch
        %156 = sbr.rel (%p154) target = $region24
      $region23: #{tpu_custom_call.1} parent=5 // pred_region
        // Predicated region
        $region25: #{tpu_custom_call.1} parent=23 // pred_check
          %p157 = pneg %p36
        $region26: #{tpu_custom_call.1} parent=23 // pred_check_branch
          %159 = sbr.rel (%p157) target = $region28
        $region27: #{tpu_custom_call.1} parent=23 // pred_region
          %s160 = sand.u32 %s26, 1
          %s161 = scalar_lea.sflag [#allocation3], %s160
          %s162 = sand.u32 %s26, 1
          %s163 = smul.addr %s162, 64
          %s164 = scalar_lea.vmem [#allocation2], %s163
          %s165 = smul.u32 4, %s16
          %167 = vsyncadd %s161, 0
          %s168 = smul.addr %s165, 2
          %s169 = smul.addr %s168, 8
          %s170 = scalar_lea.hbm %s0, %s169
          %s171 = sshll.u32 %s170, 4
          %s172 = int_to_ptr.hbm [resolvable:$true] %s171
          %s173 = sshll.u32 %s164, 4
          %s174 = int_to_ptr.vmem [resolvable:$true] %s173
          %179 = dma.hbm_to_vmem [thread:$0]  %s172, 1024, %s174, %s161, 128, 128, 8
        $region28: #{tpu_custom_call.1} parent=23 // pred_fallthru
          _
      $region24: #{tpu_custom_call.1} parent=5 // pred_fallthru
        _
      %p180 = scmp.le.s32.totalorder 1, %s16
      %p181 = scmp.lt.s32.totalorder %s16, 3
      %p182 = pnand %p180, %p181
      %p183 = pneg %p182
      // Predicated region
      $region29: #{tpu_custom_call.1} parent=5 // pred_check
        _
      $region30: #{tpu_custom_call.1} parent=5 // pred_check_branch
        %185 = sbr.rel (%p182) target = $region32
      $region31: #{tpu_custom_call.1} parent=5 // pred_region
        %s186 = ssub.s32 %s16, 1
        %s187 = sand.u32 %s29, 1
        %s188 = scalar_lea.sflag [#allocation3], %s187
        %s189 = sand.u32 %s29, 1
        %s190 = smul.addr %s189, 64
        %s191 = scalar_lea.vmem [#allocation2], %s190
        // Predicated region
        $region33: #{tpu_custom_call.1} parent=31 // pred_check
          %p192 = pneg %p42
        $region34: #{tpu_custom_call.1} parent=31 // pred_check_branch
          %194 = sbr.rel (%p192) target = $region36
        $region35: #{tpu_custom_call.1} parent=31 // pred_region
          %196 = dma.done %s188, 1024
        $region36: #{tpu_custom_call.1} parent=31 // pred_fallthru
          _
        // Predicated region
        $region37: #{tpu_custom_call.1} parent=31 // pred_check
          %p197 = pneg %p63
        $region38: #{tpu_custom_call.1} parent=31 // pred_check_branch
          %199 = sbr.rel (%p197) target = $region40
        $region39: #{tpu_custom_call.1} parent=31 // pred_region
          %201 = dma.done [#allocation6], 512
        $region40: #{tpu_custom_call.1} parent=31 // pred_fallthru
          _
        // Predicated region
        $region41: #{tpu_custom_call.1} parent=31 // pred_check
          %p202 = pneg %p84
        $region42: #{tpu_custom_call.1} parent=31 // pred_check_branch
          %204 = sbr.rel (%p202) target = $region44
        $region43: #{tpu_custom_call.1} parent=31 // pred_region
          %206 = dma.done [#allocation6], 256
        $region44: #{tpu_custom_call.1} parent=31 // pred_fallthru
          _
        %s207 = sand.u32 %s29, 1
        %s208 = scalar_lea.sflag [#allocation3], %s207
        %s209 = sand.u32 %s29, 1
        %s210 = smul.addr %s209, 64
        %s211 = scalar_lea.vmem [#allocation2], %s210
        %p212 = pneg %p42
        %p213 = pneg %p39
        %p214 = pneg %p63
        %p215 = pneg %p60
        %p216 = pneg %p84
        %p217 = pneg %p81
        %p218 = pneg %p110
        %p219 = pneg %p107
        %s220 = sand.u32 %s97, 1
        %s221 = scalar_lea.sflag [#allocation4], %s220
        %s222 = sand.u32 %s97, 1
        %s223 = smul.addr %s222, 64
        %s224 = scalar_lea.vmem [#allocation8], %s223
        %s225 = smul.u32 4, %s21
        %s226 = smul.u32 4, %s21
        %v227 = vld [vmem:[%s191] sm:$0xff]
        %v228 = vld [vmem:[%s191 + $0x8] sm:$0xff]
        %v229 = vld [vmem:[%s191 + $0x10] sm:$0xff]
        %v230 = vld [vmem:[%s191 + $0x18] sm:$0xff]
        %v231 = vld [vmem:[%s191 + $0x20] sm:$0xff]
        %v232 = vld [vmem:[%s191 + $0x28] sm:$0xff]
        %v233 = vld [vmem:[%s191 + $0x30] sm:$0xff]
        %v234 = vld [vmem:[%s191 + $0x38] sm:$0xff]
        %v235 = vld [vmem:[#allocation5] sm:$0xff]
        %v236 = vld [vmem:[#allocation5 + $0x8] sm:$0xff]
        %v237 = vld [vmem:[#allocation5 + $0x10] sm:$0xff]
        %v238 = vld [vmem:[#allocation5 + $0x18] sm:$0xff]
        %vm239 = vcmask 261120
        %v241 = vsel %vm239, %v227, 0
        %v244 = vsel %vm239, %v228, 0
        %v247 = vsel %vm239, %v229, 0
        %v250 = vsel %vm239, %v230, 0
        %v253 = vsel %vm239, %v231, 0
        %v256 = vsel %vm239, %v232, 0
        %v259 = vsel %vm239, %v233, 0
        %v262 = vsel %vm239, %v234, 0
        %264 = vmatpush.msra.mxu0 0.0
        %265 = vmatpush.msra.mxu0 0.0
        %266 = vmatpush.msra.mxu0 0.0
        %267 = vmatpush.msra.mxu0 0.0
        %268 = vmatpush.msra.mxu0 0.0
        %269 = vmatpush.msra.mxu0 0.0
        %270 = vmatpush.msra.mxu0 0.0
        %271 = vmatpush.msra.mxu0 0.0
        %272 = vmatpush.msra.mxu0 0.0
        %273 = vmatpush.msra.mxu0 0.0
        %274 = vmatpush.msra.mxu0 0.0
        %275 = vmatpush.msra.mxu0 0.0
        %276 = vmatpush.msra.mxu0 %v238
        %277 = vmatpush.msra.mxu0 %v237
        %278 = vmatpush.msra.mxu0 %v236
        %279 = vmatpush.msra.mxu0 %v235
        %280 = vmatmul.f32.gmra.mxu0 %v241
        %v281 = vpop.f32.mrf.mxu0
        %v282 = vadd.f32 0.0, %v281
        %283 = vmatmul.f32.gmra.mxu0 %v244
        %v284 = vpop.f32.mrf.mxu0
        %v285 = vadd.f32 0.0, %v284
        %286 = vmatmul.f32.gmra.mxu0 %v247
        %v287 = vpop.f32.mrf.mxu0
        %v288 = vadd.f32 0.0, %v287
        %289 = vmatmul.f32.gmra.mxu0 %v250
        %v290 = vpop.f32.mrf.mxu0
        %v291 = vadd.f32 0.0, %v290
        %292 = vmatmul.f32.gmra.mxu0 %v253
        %v293 = vpop.f32.mrf.mxu0
        %v294 = vadd.f32 0.0, %v293
        %295 = vmatmul.f32.gmra.mxu0 %v256
        %v296 = vpop.f32.mrf.mxu0
        %v297 = vadd.f32 0.0, %v296
        %298 = vmatmul.f32.gmra.mxu0 %v259
        %v299 = vpop.f32.mrf.mxu0
        %v300 = vadd.f32 0.0, %v299
        %301 = vmatmul.f32.gmra.mxu0 %v262
        %v302 = vpop.f32.mrf.mxu0
        %v303 = vadd.f32 0.0, %v302
        %304 = vdwg.mxu0
        %v305 = vmul.f32 %v282, 0.17677669
        %v306 = vmul.f32 %v285, 0.17677669
        %v307 = vmul.f32 %v288, 0.17677669
        %v308 = vmul.f32 %v291, 0.17677669
        %v309 = vmul.f32 %v294, 0.17677669
        %v310 = vmul.f32 %v297, 0.17677669
        %v311 = vmul.f32 %v300, 0.17677669
        %v312 = vmul.f32 %v303, 0.17677669
        %315 = vrot.lane.b32.xlu0 %v282, 112
        %v316 = vpop.permute.xlu0 %315
        %317 = vrot.lane.b32.xlu0 %v285, 112
        %v318 = vpop.permute.xlu0 %317
        %vm319 = vcmask 130048
        %v321 = vsel %vm319, %v305, 0
        %v324 = vsel %vm319, %v306, 0
        %v326 = vsel %vm319, %v316, 0
        %v328 = vsel %vm319, %v318, 0
        %330 = vmatpush.xpose.msra.mxu0 0.0
        %331 = vmatpush.xpose.msra.mxu0 0.0
        %332 = vmatpush.xpose.msra.mxu0 0.0
        %333 = vmatpush.xpose.msra.mxu0 0.0
        %334 = vmatpush.xpose.msra.mxu0 0.0
        %335 = vmatpush.xpose.msra.mxu0 0.0
        %336 = vmatpush.xpose.msra.mxu0 0.0
        %337 = vmatpush.xpose.msra.mxu0 0.0
        %338 = vmatpush.xpose.msra.mxu0 0.0
        %339 = vmatpush.xpose.msra.mxu0 0.0
        %340 = vmatpush.xpose.msra.mxu0 0.0
        %341 = vmatpush.xpose.msra.mxu0 0.0
        %342 = vmatpush.xpose.msra.mxu0 0.0
        %343 = vmatpush.xpose.msra.mxu0 0.0
        %344 = vmatpush.xpose.msra.mxu0 %v328
        %345 = vmatpush.xpose.msra.mxu0 %v326
        %346 = vmatmul.f32.gmra.mxu0 %v321
        %v347 = vpop.f32.mrf.mxu0
        %v348 = vadd.f32 0.0, %v347
        %349 = vmatmul.f32.gmra.mxu0 %v324
        %v350 = vpop.f32.mrf.mxu0
        %v351 = vadd.f32 0.0, %v350
        %352 = vdwg.mxu0
        %355 = vrot.lane.b32.xlu0 %v288, 112
        %v356 = vpop.permute.xlu0 %355
        %357 = vrot.lane.b32.xlu0 %v291, 112
        %v358 = vpop.permute.xlu0 %357
        %v360 = vsel %vm319, %v307, 0
        %v363 = vsel %vm319, %v308, 0
        %v365 = vsel %vm319, %v356, 0
        %v367 = vsel %vm319, %v358, 0
        %369 = vmatpush.xpose.msra.mxu0 0.0
        %370 = vmatpush.xpose.msra.mxu0 0.0
        %371 = vmatpush.xpose.msra.mxu0 0.0
        %372 = vmatpush.xpose.msra.mxu0 0.0
        %373 = vmatpush.xpose.msra.mxu0 0.0
        %374 = vmatpush.xpose.msra.mxu0 0.0
        %375 = vmatpush.xpose.msra.mxu0 0.0
        %376 = vmatpush.xpose.msra.mxu0 0.0
        %377 = vmatpush.xpose.msra.mxu0 0.0
        %378 = vmatpush.xpose.msra.mxu0 0.0
        %379 = vmatpush.xpose.msra.mxu0 0.0
        %380 = vmatpush.xpose.msra.mxu0 0.0
        %381 = vmatpush.xpose.msra.mxu0 0.0
        %382 = vmatpush.xpose.msra.mxu0 0.0
        %383 = vmatpush.xpose.msra.mxu0 %v367
        %384 = vmatpush.xpose.msra.mxu0 %v365
        %385 = vmatmul.f32.gmra.mxu0 %v360
        %v386 = vpop.f32.mrf.mxu0
        %v387 = vadd.f32 0.0, %v386
        %388 = vmatmul.f32.gmra.mxu0 %v363
        %v389 = vpop.f32.mrf.mxu0
        %v390 = vadd.f32 0.0, %v389
        %391 = vdwg.mxu0
        %394 = vrot.lane.b32.xlu0 %v294, 112
        %v395 = vpop.permute.xlu0 %394
        %396 = vrot.lane.b32.xlu0 %v297, 112
        %v397 = vpop.permute.xlu0 %396
        %v399 = vsel %vm319, %v309, 0
        %v402 = vsel %vm319, %v310, 0
        %v404 = vsel %vm319, %v395, 0
        %v406 = vsel %vm319, %v397, 0
        %408 = vmatpush.xpose.msra.mxu0 0.0
        %409 = vmatpush.xpose.msra.mxu0 0.0
        %410 = vmatpush.xpose.msra.mxu0 0.0
        %411 = vmatpush.xpose.msra.mxu0 0.0
        %412 = vmatpush.xpose.msra.mxu0 0.0
        %413 = vmatpush.xpose.msra.mxu0 0.0
        %414 = vmatpush.xpose.msra.mxu0 0.0
        %415 = vmatpush.xpose.msra.mxu0 0.0
        %416 = vmatpush.xpose.msra.mxu0 0.0
        %417 = vmatpush.xpose.msra.mxu0 0.0
        %418 = vmatpush.xpose.msra.mxu0 0.0
        %419 = vmatpush.xpose.msra.mxu0 0.0
        %420 = vmatpush.xpose.msra.mxu0 0.0
        %421 = vmatpush.xpose.msra.mxu0 0.0
        %422 = vmatpush.xpose.msra.mxu0 %v406
        %423 = vmatpush.xpose.msra.mxu0 %v404
        %424 = vmatmul.f32.gmra.mxu0 %v399
        %v425 = vpop.f32.mrf.mxu0
        %v426 = vadd.f32 0.0, %v425
        %427 = vmatmul.f32.gmra.mxu0 %v402
        %v428 = vpop.f32.mrf.mxu0
        %v429 = vadd.f32 0.0, %v428
        %430 = vdwg.mxu0
        %433 = vrot.lane.b32.xlu0 %v300, 112
        %v434 = vpop.permute.xlu0 %433
        %435 = vrot.lane.b32.xlu0 %v303, 112
        %v436 = vpop.permute.xlu0 %435
        %v438 = vsel %vm319, %v311, 0
        %v441 = vsel %vm319, %v312, 0
        %v443 = vsel %vm319, %v434, 0
        %v445 = vsel %vm319, %v436, 0
        %447 = vmatpush.xpose.msra.mxu0 0.0
        %448 = vmatpush.xpose.msra.mxu0 0.0
        %449 = vmatpush.xpose.msra.mxu0 0.0
        %450 = vmatpush.xpose.msra.mxu0 0.0
        %451 = vmatpush.xpose.msra.mxu0 0.0
        %452 = vmatpush.xpose.msra.mxu0 0.0
        %453 = vmatpush.xpose.msra.mxu0 0.0
        %454 = vmatpush.xpose.msra.mxu0 0.0
        %455 = vmatpush.xpose.msra.mxu0 0.0
        %456 = vmatpush.xpose.msra.mxu0 0.0
        %457 = vmatpush.xpose.msra.mxu0 0.0
        %458 = vmatpush.xpose.msra.mxu0 0.0
        %459 = vmatpush.xpose.msra.mxu0 0.0
        %460 = vmatpush.xpose.msra.mxu0 0.0
        %461 = vmatpush.xpose.msra.mxu0 %v445
        %462 = vmatpush.xpose.msra.mxu0 %v443
        %463 = vmatmul.f32.gmra.mxu0 %v438
        %v464 = vpop.f32.mrf.mxu0
        %v465 = vadd.f32 0.0, %v464
        %466 = vmatmul.f32.gmra.mxu0 %v441
        %v467 = vpop.f32.mrf.mxu0
        %v468 = vadd.f32 0.0, %v467
        %469 = vdwg.mxu0
        %v470 = vsel %vm319, %v348, -inf
        %471 = vmax.xlane.f32.xlu0 %v470
        %v472 = vpop.xlane.xlu0 %471
        %v473 = vsel %vm319, %v351, -inf
        %474 = vmax.xlane.f32.xlu0 %v473
        %v475 = vpop.xlane.xlu0 %474
        %v476 = vsel %vm319, %v387, -inf
        %477 = vmax.xlane.f32.xlu0 %v476
        %v478 = vpop.xlane.xlu0 %477
        %v479 = vsel %vm319, %v390, -inf
        %480 = vmax.xlane.f32.xlu0 %v479
        %v481 = vpop.xlane.xlu0 %480
        %v482 = vsel %vm319, %v426, -inf
        %483 = vmax.xlane.f32.xlu0 %v482
        %v484 = vpop.xlane.xlu0 %483
        %v485 = vsel %vm319, %v429, -inf
        %486 = vmax.xlane.f32.xlu0 %v485
        %v487 = vpop.xlane.xlu0 %486
        %v488 = vsel %vm319, %v465, -inf
        %489 = vmax.xlane.f32.xlu0 %v488
        %v490 = vpop.xlane.xlu0 %489
        %v491 = vsel %vm319, %v468, -inf
        %492 = vmax.xlane.f32.xlu0 %v491
        %v493 = vpop.xlane.xlu0 %492
        %v494 = vld [vmem:[#allocation7] sm:$0xff]
        %v495 = vld [vmem:[#allocation7 + $0x8] sm:$0xff]
        %v496 = vadd.f32 %v348, %v494
        %v497 = vadd.f32 %v351, %v495
        %v498 = vadd.f32 %v387, %v494
        %v499 = vadd.f32 %v390, %v495
        %v500 = vadd.f32 %v426, %v494
        %v501 = vadd.f32 %v429, %v495
        %v502 = vadd.f32 %v465, %v494
        %v503 = vadd.f32 %v468, %v495
        %v504 = vsub.f32 %v496, %v472
        %v505 = vsub.f32 %v497, %v475
        %v506 = vsub.f32 %v498, %v478
        %v507 = vsub.f32 %v499, %v481
        %v508 = vsub.f32 %v500, %v484
        %v509 = vsub.f32 %v501, %v487
        %v510 = vsub.f32 %v502, %v490
        %v511 = vsub.f32 %v503, %v493
        %v512 = vmul.f32 %v504, 1.442695
        %v513 = vpow.pop %v512
        %v514 = vmul.f32 %v505, 1.442695
        %v515 = vpow.pop %v514
        %v516 = vmul.f32 %v506, 1.442695
        %v517 = vpow.pop %v516
        %v518 = vmul.f32 %v507, 1.442695
        %v519 = vpow.pop %v518
        %v520 = vmul.f32 %v508, 1.442695
        %v521 = vpow.pop %v520
        %v522 = vmul.f32 %v509, 1.442695
        %v523 = vpow.pop %v522
        %v524 = vmul.f32 %v510, 1.442695
        %v525 = vpow.pop %v524
        %v526 = vmul.f32 %v511, 1.442695
        %v527 = vpow.pop %v526
        %v528 = vsel %vm319, %v513, 0.0
        %529 = vadd.xlane.f32.xlu0 %v528
        %v530 = vpop.xlane.xlu0 %529
        %v531 = vsel %vm319, %v515, 0.0
        %532 = vadd.xlane.f32.xlu0 %v531
        %v533 = vpop.xlane.xlu0 %532
        %v534 = vsel %vm319, %v517, 0.0
        %535 = vadd.xlane.f32.xlu0 %v534
        %v536 = vpop.xlane.xlu0 %535
        %v537 = vsel %vm319, %v519, 0.0
        %538 = vadd.xlane.f32.xlu0 %v537
        %v539 = vpop.xlane.xlu0 %538
        %v540 = vsel %vm319, %v521, 0.0
        %541 = vadd.xlane.f32.xlu0 %v540
        %v542 = vpop.xlane.xlu0 %541
        %v543 = vsel %vm319, %v523, 0.0
        %544 = vadd.xlane.f32.xlu0 %v543
        %v545 = vpop.xlane.xlu0 %544
        %v546 = vsel %vm319, %v525, 0.0
        %547 = vadd.xlane.f32.xlu0 %v546
        %v548 = vpop.xlane.xlu0 %547
        %v549 = vsel %vm319, %v527, 0.0
        %550 = vadd.xlane.f32.xlu0 %v549
        %v551 = vpop.xlane.xlu0 %550
        %552 = vrot.lane.b32.xlu0 %v282, 96
        %v553 = vpop.permute.xlu0 %552
        %554 = vrot.lane.b32.xlu0 %v285, 96
        %v555 = vpop.permute.xlu0 %554
        %556 = vrot.lane.b32.xlu0 %v288, 96
        %v557 = vpop.permute.xlu0 %556
        %558 = vrot.lane.b32.xlu0 %v291, 96
        %v559 = vpop.permute.xlu0 %558
        %560 = vrot.lane.b32.xlu0 %v294, 96
        %v561 = vpop.permute.xlu0 %560
        %562 = vrot.lane.b32.xlu0 %v297, 96
        %v563 = vpop.permute.xlu0 %562
        %564 = vrot.lane.b32.xlu0 %v300, 96
        %v565 = vpop.permute.xlu0 %564
        %566 = vrot.lane.b32.xlu0 %v303, 96
        %v567 = vpop.permute.xlu0 %566
        %576 = vxpose.xlu0.b32.start [1/16] %v553, 128
        %577 = vxpose.xlu0.b32.cont [2/16] %v555, 128
        %578 = vxpose.xlu0.b32.cont [3/16] 0.0, 128
        %579 = vxpose.xlu0.b32.cont [4/16] 0.0, 128
        %580 = vxpose.xlu0.b32.cont [5/16] 0.0, 128
        %581 = vxpose.xlu0.b32.cont [6/16] 0.0, 128
        %582 = vxpose.xlu0.b32.cont [7/16] 0.0, 128
        %583 = vxpose.xlu0.b32.cont [8/16] 0.0, 128
        %584 = vxpose.xlu0.b32.cont [9/16] 0.0, 128
        %585 = vxpose.xlu0.b32.cont [10/16] 0.0, 128
        %586 = vxpose.xlu0.b32.cont [11/16] 0.0, 128
        %587 = vxpose.xlu0.b32.cont [12/16] 0.0, 128
        %588 = vxpose.xlu0.b32.cont [13/16] 0.0, 128
        %589 = vxpose.xlu0.b32.cont [14/16] 0.0, 128
        %590 = vxpose.xlu0.b32.cont [15/16] 0.0, 128
        %591 = vxpose.xlu0.b32.end [16/16] 0.0, 128
        %v592 = vpop.trf.xlu0
        %v593 = vpop.trf.xlu0
        %v594 = vpop.trf.xlu0
        %v595 = vpop.trf.xlu0
        %v596 = vpop.trf.xlu0
        %v597 = vpop.trf.xlu0
        %v598 = vpop.trf.xlu0
        %v599 = vpop.trf.xlu0
        %v600 = vpop.trf.xlu0
        %v601 = vpop.trf.xlu0
        %v602 = vpop.trf.xlu0
        %v603 = vpop.trf.xlu0
        %v604 = vpop.trf.xlu0
        %v605 = vpop.trf.xlu0
        %v606 = vpop.trf.xlu0
        %v607 = vpop.trf.xlu0
        %608 = vxpose.xlu0.b32.start [1/16] %v557, 128
        %609 = vxpose.xlu0.b32.cont [2/16] %v559, 128
        %610 = vxpose.xlu0.b32.cont [3/16] 0.0, 128
        %611 = vxpose.xlu0.b32.cont [4/16] 0.0, 128
        %612 = vxpose.xlu0.b32.cont [5/16] 0.0, 128
        %613 = vxpose.xlu0.b32.cont [6/16] 0.0, 128
        %614 = vxpose.xlu0.b32.cont [7/16] 0.0, 128
        %615 = vxpose.xlu0.b32.cont [8/16] 0.0, 128
        %616 = vxpose.xlu0.b32.cont [9/16] 0.0, 128
        %617 = vxpose.xlu0.b32.cont [10/16] 0.0, 128
        %618 = vxpose.xlu0.b32.cont [11/16] 0.0, 128
        %619 = vxpose.xlu0.b32.cont [12/16] 0.0, 128
        %620 = vxpose.xlu0.b32.cont [13/16] 0.0, 128
        %621 = vxpose.xlu0.b32.cont [14/16] 0.0, 128
        %622 = vxpose.xlu0.b32.cont [15/16] 0.0, 128
        %623 = vxpose.xlu0.b32.end [16/16] 0.0, 128
        %v624 = vpop.trf.xlu0
        %v625 = vpop.trf.xlu0
        %v626 = vpop.trf.xlu0
        %v627 = vpop.trf.xlu0
        %v628 = vpop.trf.xlu0
        %v629 = vpop.trf.xlu0
        %v630 = vpop.trf.xlu0
        %v631 = vpop.trf.xlu0
        %v632 = vpop.trf.xlu0
        %v633 = vpop.trf.xlu0
        %v634 = vpop.trf.xlu0
        %v635 = vpop.trf.xlu0
        %v636 = vpop.trf.xlu0
        %v637 = vpop.trf.xlu0
        %v638 = vpop.trf.xlu0
        %v639 = vpop.trf.xlu0
        %640 = vxpose.xlu0.b32.start [1/16] %v561, 128
        %641 = vxpose.xlu0.b32.cont [2/16] %v563, 128
        %642 = vxpose.xlu0.b32.cont [3/16] 0.0, 128
        %643 = vxpose.xlu0.b32.cont [4/16] 0.0, 128
        %644 = vxpose.xlu0.b32.cont [5/16] 0.0, 128
        %645 = vxpose.xlu0.b32.cont [6/16] 0.0, 128
        %646 = vxpose.xlu0.b32.cont [7/16] 0.0, 128
        %647 = vxpose.xlu0.b32.cont [8/16] 0.0, 128
        %648 = vxpose.xlu0.b32.cont [9/16] 0.0, 128
        %649 = vxpose.xlu0.b32.cont [10/16] 0.0, 128
        %650 = vxpose.xlu0.b32.cont [11/16] 0.0, 128
        %651 = vxpose.xlu0.b32.cont [12/16] 0.0, 128
        %652 = vxpose.xlu0.b32.cont [13/16] 0.0, 128
        %653 = vxpose.xlu0.b32.cont [14/16] 0.0, 128
        %654 = vxpose.xlu0.b32.cont [15/16] 0.0, 128
        %655 = vxpose.xlu0.b32.end [16/16] 0.0, 128
        %v656 = vpop.trf.xlu0
        %v657 = vpop.trf.xlu0
        %v658 = vpop.trf.xlu0
        %v659 = vpop.trf.xlu0
        %v660 = vpop.trf.xlu0
        %v661 = vpop.trf.xlu0
        %v662 = vpop.trf.xlu0
        %v663 = vpop.trf.xlu0
        %v664 = vpop.trf.xlu0
        %v665 = vpop.trf.xlu0
        %v666 = vpop.trf.xlu0
        %v667 = vpop.trf.xlu0
        %v668 = vpop.trf.xlu0
        %v669 = vpop.trf.xlu0
        %v670 = vpop.trf.xlu0
        %v671 = vpop.trf.xlu0
        %672 = vxpose.xlu0.b32.start [1/16] %v565, 128
        %673 = vxpose.xlu0.b32.cont [2/16] %v567, 128
        %674 = vxpose.xlu0.b32.cont [3/16] 0.0, 128
        %675 = vxpose.xlu0.b32.cont [4/16] 0.0, 128
        %676 = vxpose.xlu0.b32.cont [5/16] 0.0, 128
        %677 = vxpose.xlu0.b32.cont [6/16] 0.0, 128
        %678 = vxpose.xlu0.b32.cont [7/16] 0.0, 128
        %679 = vxpose.xlu0.b32.cont [8/16] 0.0, 128
        %680 = vxpose.xlu0.b32.cont [9/16] 0.0, 128
        %681 = vxpose.xlu0.b32.cont [10/16] 0.0, 128
        %682 = vxpose.xlu0.b32.cont [11/16] 0.0, 128
        %683 = vxpose.xlu0.b32.cont [12/16] 0.0, 128
        %684 = vxpose.xlu0.b32.cont [13/16] 0.0, 128
        %685 = vxpose.xlu0.b32.cont [14/16] 0.0, 128
        %686 = vxpose.xlu0.b32.cont [15/16] 0.0, 128
        %687 = vxpose.xlu0.b32.end [16/16] 0.0, 128
        %v688 = vpop.trf.xlu0
        %v689 = vpop.trf.xlu0
        %v690 = vpop.trf.xlu0
        %v691 = vpop.trf.xlu0
        %v692 = vpop.trf.xlu0
        %v693 = vpop.trf.xlu0
        %v694 = vpop.trf.xlu0
        %v695 = vpop.trf.xlu0
        %v696 = vpop.trf.xlu0
        %v697 = vpop.trf.xlu0
        %v698 = vpop.trf.xlu0
        %v699 = vpop.trf.xlu0
        %v700 = vpop.trf.xlu0
        %v701 = vpop.trf.xlu0
        %v702 = vpop.trf.xlu0
        %v703 = vpop.trf.xlu0
        %v705 = vsel %vm319, %v592, 0
        %v708 = vsel %vm319, %v593, 0
        %v711 = vsel %vm319, %v513, 0
        %v714 = vsel %vm319, %v515, 0
        %716 = vmatpush.xpose.msra.mxu0 0.0
        %717 = vmatpush.xpose.msra.mxu0 0.0
        %718 = vmatpush.xpose.msra.mxu0 0.0
        %719 = vmatpush.xpose.msra.mxu0 0.0
        %720 = vmatpush.xpose.msra.mxu0 0.0
        %721 = vmatpush.xpose.msra.mxu0 0.0
        %722 = vmatpush.xpose.msra.mxu0 0.0
        %723 = vmatpush.xpose.msra.mxu0 0.0
        %724 = vmatpush.xpose.msra.mxu0 0.0
        %725 = vmatpush.xpose.msra.mxu0 0.0
        %726 = vmatpush.xpose.msra.mxu0 0.0
        %727 = vmatpush.xpose.msra.mxu0 0.0
        %728 = vmatpush.xpose.msra.mxu0 0.0
        %729 = vmatpush.xpose.msra.mxu0 0.0
        %730 = vmatpush.xpose.msra.mxu0 %v714
        %731 = vmatpush.xpose.msra.mxu0 %v711
        %732 = vmatmul.f32.gmra.mxu0 %v705
        %v733 = vpop.f32.mrf.mxu0
        %v734 = vadd.f32 0.0, %v733
        %735 = vmatmul.f32.gmra.mxu0 %v708
        %v736 = vpop.f32.mrf.mxu0
        %v737 = vadd.f32 0.0, %v736
        %738 = vdwg.mxu0
        %v740 = vsel %vm319, %v624, 0
        %v743 = vsel %vm319, %v625, 0
        %v746 = vsel %vm319, %v517, 0
        %v749 = vsel %vm319, %v519, 0
        %751 = vmatpush.xpose.msra.mxu0 0.0
        %752 = vmatpush.xpose.msra.mxu0 0.0
        %753 = vmatpush.xpose.msra.mxu0 0.0
        %754 = vmatpush.xpose.msra.mxu0 0.0
        %755 = vmatpush.xpose.msra.mxu0 0.0
        %756 = vmatpush.xpose.msra.mxu0 0.0
        %757 = vmatpush.xpose.msra.mxu0 0.0
        %758 = vmatpush.xpose.msra.mxu0 0.0
        %759 = vmatpush.xpose.msra.mxu0 0.0
        %760 = vmatpush.xpose.msra.mxu0 0.0
        %761 = vmatpush.xpose.msra.mxu0 0.0
        %762 = vmatpush.xpose.msra.mxu0 0.0
        %763 = vmatpush.xpose.msra.mxu0 0.0
        %764 = vmatpush.xpose.msra.mxu0 0.0
        %765 = vmatpush.xpose.msra.mxu0 %v749
        %766 = vmatpush.xpose.msra.mxu0 %v746
        %767 = vmatmul.f32.gmra.mxu0 %v740
        %v768 = vpop.f32.mrf.mxu0
        %v769 = vadd.f32 0.0, %v768
        %770 = vmatmul.f32.gmra.mxu0 %v743
        %v771 = vpop.f32.mrf.mxu0
        %v772 = vadd.f32 0.0, %v771
        %773 = vdwg.mxu0
        %v775 = vsel %vm319, %v656, 0
        %v778 = vsel %vm319, %v657, 0
        %v781 = vsel %vm319, %v521, 0
        %v784 = vsel %vm319, %v523, 0
        %786 = vmatpush.xpose.msra.mxu0 0.0
        %787 = vmatpush.xpose.msra.mxu0 0.0
        %788 = vmatpush.xpose.msra.mxu0 0.0
        %789 = vmatpush.xpose.msra.mxu0 0.0
        %790 = vmatpush.xpose.msra.mxu0 0.0
        %791 = vmatpush.xpose.msra.mxu0 0.0
        %792 = vmatpush.xpose.msra.mxu0 0.0
        %793 = vmatpush.xpose.msra.mxu0 0.0
        %794 = vmatpush.xpose.msra.mxu0 0.0
        %795 = vmatpush.xpose.msra.mxu0 0.0
        %796 = vmatpush.xpose.msra.mxu0 0.0
        %797 = vmatpush.xpose.msra.mxu0 0.0
        %798 = vmatpush.xpose.msra.mxu0 0.0
        %799 = vmatpush.xpose.msra.mxu0 0.0
        %800 = vmatpush.xpose.msra.mxu0 %v784
        %801 = vmatpush.xpose.msra.mxu0 %v781
        %802 = vmatmul.f32.gmra.mxu0 %v775
        %v803 = vpop.f32.mrf.mxu0
        %v804 = vadd.f32 0.0, %v803
        %805 = vmatmul.f32.gmra.mxu0 %v778
        %v806 = vpop.f32.mrf.mxu0
        %v807 = vadd.f32 0.0, %v806
        %808 = vdwg.mxu0
        %v810 = vsel %vm319, %v688, 0
        %v813 = vsel %vm319, %v689, 0
        %v816 = vsel %vm319, %v525, 0
        %v819 = vsel %vm319, %v527, 0
        %821 = vmatpush.xpose.msra.mxu0 0.0
        %822 = vmatpush.xpose.msra.mxu0 0.0
        %823 = vmatpush.xpose.msra.mxu0 0.0
        %824 = vmatpush.xpose.msra.mxu0 0.0
        %825 = vmatpush.xpose.msra.mxu0 0.0
        %826 = vmatpush.xpose.msra.mxu0 0.0
        %827 = vmatpush.xpose.msra.mxu0 0.0
        %828 = vmatpush.xpose.msra.mxu0 0.0
        %829 = vmatpush.xpose.msra.mxu0 0.0
        %830 = vmatpush.xpose.msra.mxu0 0.0
        %831 = vmatpush.xpose.msra.mxu0 0.0
        %832 = vmatpush.xpose.msra.mxu0 0.0
        %833 = vmatpush.xpose.msra.mxu0 0.0
        %834 = vmatpush.xpose.msra.mxu0 0.0
        %835 = vmatpush.xpose.msra.mxu0 %v819
        %836 = vmatpush.xpose.msra.mxu0 %v816
        %837 = vmatmul.f32.gmra.mxu0 %v810
        %v838 = vpop.f32.mrf.mxu0
        %v839 = vadd.f32 0.0, %v838
        %840 = vmatmul.f32.gmra.mxu0 %v813
        %v841 = vpop.f32.mrf.mxu0
        %v842 = vadd.f32 0.0, %v841
        %843 = vdwg.mxu0
        %v844 = vrcp.pop %v530
        %v845 = vmul.f32 %v530, %v844
        %v846 = vsub.f32 1.0, %v845
        %v847 = vmul.f32 %v844, %v846
        %v848 = vadd.f32 %v844, %v847
        %vm849 = vweird.f32 %v530
        %vm850 = vweird.f32 %v844
        %vm851 = vmor %vm849, %vm850
        %v852 = vsel %vm851, %v844, %v848
        %v853 = vand.u32 2147483647, %v530
        %vm854 = vcmp.eq.f32.partialorder %v853, 8.507059e+37
        %v855 = vand.u32 %v530, 2147483648
        %v856 = vor.u32 1.1754944e-38, %v855
        %v857 = vsel %vm854, %v856, %v852
        %v858 = vmul.f32 1.0, %v857
        %v859 = vrcp.pop %v533
        %v860 = vmul.f32 %v533, %v859
        %v861 = vsub.f32 1.0, %v860
        %v862 = vmul.f32 %v859, %v861
        %v863 = vadd.f32 %v859, %v862
        %vm864 = vweird.f32 %v533
        %vm865 = vweird.f32 %v859
        %vm866 = vmor %vm864, %vm865
        %v867 = vsel %vm866, %v859, %v863
        %v868 = vand.u32 2147483647, %v533
        %vm869 = vcmp.eq.f32.partialorder %v868, 8.507059e+37
        %v870 = vand.u32 %v533, 2147483648
        %v871 = vor.u32 1.1754944e-38, %v870
        %v872 = vsel %vm869, %v871, %v867
        %v873 = vmul.f32 1.0, %v872
        %v874 = vrcp.pop %v536
        %v875 = vmul.f32 %v536, %v874
        %v876 = vsub.f32 1.0, %v875
        %v877 = vmul.f32 %v874, %v876
        %v878 = vadd.f32 %v874, %v877
        %vm879 = vweird.f32 %v536
        %vm880 = vweird.f32 %v874
        %vm881 = vmor %vm879, %vm880
        %v882 = vsel %vm881, %v874, %v878
        %v883 = vand.u32 2147483647, %v536
        %vm884 = vcmp.eq.f32.partialorder %v883, 8.507059e+37
        %v885 = vand.u32 %v536, 2147483648
        %v886 = vor.u32 1.1754944e-38, %v885
        %v887 = vsel %vm884, %v886, %v882
        %v888 = vmul.f32 1.0, %v887
        %v889 = vrcp.pop %v539
        %v890 = vmul.f32 %v539, %v889
        %v891 = vsub.f32 1.0, %v890
        %v892 = vmul.f32 %v889, %v891
        %v893 = vadd.f32 %v889, %v892
        %vm894 = vweird.f32 %v539
        %vm895 = vweird.f32 %v889
        %vm896 = vmor %vm894, %vm895
        %v897 = vsel %vm896, %v889, %v893
        %v898 = vand.u32 2147483647, %v539
        %vm899 = vcmp.eq.f32.partialorder %v898, 8.507059e+37
        %v900 = vand.u32 %v539, 2147483648
        %v901 = vor.u32 1.1754944e-38, %v900
        %v902 = vsel %vm899, %v901, %v897
        %v903 = vmul.f32 1.0, %v902
        %v904 = vrcp.pop %v542
        %v905 = vmul.f32 %v542, %v904
        %v906 = vsub.f32 1.0, %v905
        %v907 = vmul.f32 %v904, %v906
        %v908 = vadd.f32 %v904, %v907
        %vm909 = vweird.f32 %v542
        %vm910 = vweird.f32 %v904
        %vm911 = vmor %vm909, %vm910
        %v912 = vsel %vm911, %v904, %v908
        %v913 = vand.u32 2147483647, %v542
        %vm914 = vcmp.eq.f32.partialorder %v913, 8.507059e+37
        %v915 = vand.u32 %v542, 2147483648
        %v916 = vor.u32 1.1754944e-38, %v915
        %v917 = vsel %vm914, %v916, %v912
        %v918 = vmul.f32 1.0, %v917
        %v919 = vrcp.pop %v545
        %v920 = vmul.f32 %v545, %v919
        %v921 = vsub.f32 1.0, %v920
        %v922 = vmul.f32 %v919, %v921
        %v923 = vadd.f32 %v919, %v922
        %vm924 = vweird.f32 %v545
        %vm925 = vweird.f32 %v919
        %vm926 = vmor %vm924, %vm925
        %v927 = vsel %vm926, %v919, %v923
        %v928 = vand.u32 2147483647, %v545
        %vm929 = vcmp.eq.f32.partialorder %v928, 8.507059e+37
        %v930 = vand.u32 %v545, 2147483648
        %v931 = vor.u32 1.1754944e-38, %v930
        %v932 = vsel %vm929, %v931, %v927
        %v933 = vmul.f32 1.0, %v932
        %v934 = vrcp.pop %v548
        %v935 = vmul.f32 %v548, %v934
        %v936 = vsub.f32 1.0, %v935
        %v937 = vmul.f32 %v934, %v936
        %v938 = vadd.f32 %v934, %v937
        %vm939 = vweird.f32 %v548
        %vm940 = vweird.f32 %v934
        %vm941 = vmor %vm939, %vm940
        %v942 = vsel %vm941, %v934, %v938
        %v943 = vand.u32 2147483647, %v548
        %vm944 = vcmp.eq.f32.partialorder %v943, 8.507059e+37
        %v945 = vand.u32 %v548, 2147483648
        %v946 = vor.u32 1.1754944e-38, %v945
        %v947 = vsel %vm944, %v946, %v942
        %v948 = vmul.f32 1.0, %v947
        %v949 = vrcp.pop %v551
        %v950 = vmul.f32 %v551, %v949
        %v951 = vsub.f32 1.0, %v950
        %v952 = vmul.f32 %v949, %v951
        %v953 = vadd.f32 %v949, %v952
        %vm954 = vweird.f32 %v551
        %vm955 = vweird.f32 %v949
        %vm956 = vmor %vm954, %vm955
        %v957 = vsel %vm956, %v949, %v953
        %v958 = vand.u32 2147483647, %v551
        %vm959 = vcmp.eq.f32.partialorder %v958, 8.507059e+37
        %v960 = vand.u32 %v551, 2147483648
        %v961 = vor.u32 1.1754944e-38, %v960
        %v962 = vsel %vm959, %v961, %v957
        %v963 = vmul.f32 1.0, %v962
        %v972 = vlaneseq
        %v973 = vand.u32 %v972, 127
        %v974 = vperm.slane %v858, %v973
        %v975 = vadd.s32 %v973, 4294967288
        %v976 = vperm.slane %v873, %v975
        %vm977 = vcmask 130112
        %v978 = vsel %vm977, %v976, %v974
        %v979 = vperm.slane %v888, %v973
        %v980 = vperm.slane %v903, %v975
        %v981 = vsel %vm977, %v980, %v979
        %v982 = vperm.slane %v918, %v973
        %v983 = vperm.slane %v933, %v975
        %v984 = vsel %vm977, %v983, %v982
        %v985 = vperm.slane %v948, %v973
        %v986 = vperm.slane %v963, %v975
        %v987 = vsel %vm977, %v986, %v985
        %vm988 = vcmask 1042434
        %v989 = vsel %vm988, %v978, %v978
        %vm990 = vcmask 1043459
        %v991 = vsel %vm990, %v978, %v989
        %vm992 = vcmask 1044484
        %v993 = vsel %vm992, %v978, %v991
        %vm994 = vcmask 1045509
        %v995 = vsel %vm994, %v978, %v993
        %vm996 = vcmask 1046534
        %v997 = vsel %vm996, %v978, %v995
        %vm998 = vcmask 1047559
        %v999 = vsel %vm998, %v978, %v997
        %v1000 = vsel %vm988, %v981, %v981
        %v1001 = vsel %vm990, %v981, %v1000
        %v1002 = vsel %vm992, %v981, %v1001
        %v1003 = vsel %vm994, %v981, %v1002
        %v1004 = vsel %vm996, %v981, %v1003
        %v1005 = vsel %vm998, %v981, %v1004
        %v1006 = vsel %vm988, %v984, %v984
        %v1007 = vsel %vm990, %v984, %v1006
        %v1008 = vsel %vm992, %v984, %v1007
        %v1009 = vsel %vm994, %v984, %v1008
        %v1010 = vsel %vm996, %v984, %v1009
        %v1011 = vsel %vm998, %v984, %v1010
        %v1012 = vsel %vm988, %v987, %v987
        %v1013 = vsel %vm990, %v987, %v1012
        %v1014 = vsel %vm992, %v987, %v1013
        %v1015 = vsel %vm994, %v987, %v1014
        %v1016 = vsel %vm996, %v987, %v1015
        %v1017 = vsel %vm998, %v987, %v1016
        %v1022 = vmul.f32 %v734, %v999
        %v1023 = vmul.f32 %v737, %v999
        %v1024 = vmul.f32 %v769, %v1005
        %v1025 = vmul.f32 %v772, %v1005
        %v1026 = vmul.f32 %v804, %v1011
        %v1027 = vmul.f32 %v807, %v1011
        %v1028 = vmul.f32 %v839, %v1017
        %v1029 = vmul.f32 %v842, %v1017
        %1030 = vst.msk [vmem:[%s224] sm:$0xff] %vm319, %v1022
        %1031 = vst.msk [vmem:[%s224 + $0x8] sm:$0xff] %vm319, %v1023
        %1032 = vst.msk [vmem:[%s224 + $0x10] sm:$0xff] %vm319, %v1024
        %1033 = vst.msk [vmem:[%s224 + $0x18] sm:$0xff] %vm319, %v1025
        %1034 = vst.msk [vmem:[%s224 + $0x20] sm:$0xff] %vm319, %v1026
        %1035 = vst.msk [vmem:[%s224 + $0x28] sm:$0xff] %vm319, %v1027
        %1036 = vst.msk [vmem:[%s224 + $0x30] sm:$0xff] %vm319, %v1028
        %1037 = vst.msk [vmem:[%s224 + $0x38] sm:$0xff] %vm319, %v1029
        %s1038 = sand.u32 %s97, 1
        %s1039 = scalar_lea.sflag [#allocation4], %s1038
        %s1040 = sand.u32 %s97, 1
        %s1041 = smul.addr %s1040, 64
        %s1042 = scalar_lea.vmem [#allocation8], %s1041
        // Predicated region
        $region45: #{tpu_custom_call.1} parent=31 // pred_check
          %p1043 = pneg %p107
        $region46: #{tpu_custom_call.1} parent=31 // pred_check_branch
          %1045 = sbr.rel (%p1043) target = $region48
        $region47: #{tpu_custom_call.1} parent=31 // pred_region
          %s1046 = smul.u32 4, %s21
          %1048 = vsyncadd %s1039, 0
          %s1049 = smul.addr %s1046, 2
          %s1050 = smul.addr %s1049, 8
          %s1051 = scalar_lea.hbm %s3, %s1050
          %s1052 = sshll.u32 %s1042, 4
          %s1053 = int_to_ptr.vmem [resolvable:$true] %s1052
          %s1054 = sshll.u32 %s1051, 4
          %s1055 = int_to_ptr.hbm [resolvable:$true] %s1054
          %1060 = dma.vmem_to_hbm [thread:$0]  %s1053, 1024, %s1055, %s1039, 128, 128, 8
        $region48: #{tpu_custom_call.1} parent=31 // pred_fallthru
          _
      $region32: #{tpu_custom_call.1} parent=5 // pred_fallthru
        _
      %p1061 = scmp.le.s32.totalorder 2, %s16
      // Predicated region
      $region49: #{tpu_custom_call.1} parent=5 // pred_check
        %p1062 = pneg %p1061
      $region50: #{tpu_custom_call.1} parent=5 // pred_check_branch
        %1064 = sbr.rel (%p1062) target = $region52
      $region51: #{tpu_custom_call.1} parent=5 // pred_region
        %s1065 = ssub.s32 %s16, 2
        // Predicated region
        $region53: #{tpu_custom_call.1} parent=51 // pred_check
          %p1066 = pneg %p113
        $region54: #{tpu_custom_call.1} parent=51 // pred_check_branch
          %1068 = sbr.rel (%p1066) target = $region56
        $region55: #{tpu_custom_call.1} parent=51 // pred_region
          %s1069 = sand.u32 %s98, 1
          %s1070 = scalar_lea.sflag [#allocation4], %s1069
          %s1071 = sand.u32 %s98, 1
          %s1072 = smul.addr %s1071, 64
          %s1073 = scalar_lea.vmem [#allocation8], %s1072
          %1075 = dma.done %s1070, 1024
        $region56: #{tpu_custom_call.1} parent=51 // pred_fallthru
          _
      $region52: #{tpu_custom_call.1} parent=5 // pred_fallthru
        _
    $region6: #{tpu_custom_call.1} parent=1 // loop_footer
      %s20 = sadd.s32 1, %s16
    $region7: #{tpu_custom_call.1} parent=1 // loop_footer_branch
      %15 = sbr.rel target = $region3
    $region8: #{tpu_custom_call.1} parent=1 // loop_exit
      _
    %1076 = vsyncpa [#allocation3], 1
    %s1077 = scalar_lea.sflag [#allocation3], 1
    %1078 = vsyncpa %s1077, 1
    %1079 = vsyncpa [#allocation6], 1
    %1080 = vsyncpa [#allocation4], 1
    %s1081 = scalar_lea.sflag [#allocation4], 1
    %1082 = vsyncpa %s1081, 1

</llo_original>
